<compile_context>
chip_gen: v6e
topology: v6e:2x2x1
jax: 0.10.0
libtpu: 0.0.40
codegen_flags: <defaults>
</compile_context>

<pallas_src>
import jax
import jax.numpy as jnp
from jax.experimental import pallas as pl
from jax.experimental.pallas import tpu as pltpu


def _probe_stride0_broadcast() -> bool:
    """True iff `ref[n, pl.ds(k, S, stride=0), :]` (load-unit sublane broadcast)
    is available in the installed jax / Mosaic.  Older jax rejects stride=0 in
    pl.ds; in that case the kernel falls back to a vreg-slice broadcast (XLU)."""
    try:
        def _k(x_ref, o_ref):
            o_ref[...] = x_ref[2, pl.ds(3, 8, stride=0), :]

        x = jnp.arange(8 * 8 * 8, dtype=jnp.float32).reshape(8, 8, 8)
        out = pl.pallas_call(
            _k, out_shape=jax.ShapeDtypeStruct((8, 8), jnp.float32)
        )(x)
        return bool(jnp.all(out == x[2, 3][None, :]))
    except Exception:
        return False


_STRIDE0_BCAST = _probe_stride0_broadcast()


def _fused_forward_kernel(x2_ref, out_ref, y_scr):
    """Entire forward pass in a single VMEM-resident invocation.

    x2_ref / out_ref / y_scr: (D0, D1, D2) with (D1, D2) on (sublane, lane).
        out[n, m, b] = sum_k (x2[k, m, b] - 3) * (x2[n, k, b] - 3)
    """
    y = x2_ref[...] - 3.0                 # fused (x2 - 3); stays in vregs (f32)
    d0, d1, _ = y.shape

    if _STRIDE0_BCAST:
        # Park y in VMEM once so the 64 broadcast rows are re-read with stride-0
        # vld (3 load slots) instead of XLU sublane broadcasts (2 XLU slots).
        y_scr[...] = y

    for n in range(d0):                    # static unroll: fine at D0 = D1 = 8
        if _STRIDE0_BCAST:
            # (d1, d2) tiles whose every sublane is y[n, k, :] (load-unit bcast).
            rows = [y_scr[n, pl.ds(k, d1, stride=0), :] for k in range(d1)]
        else:
            # Fallback: (1, d2) vreg slices, broadcast in the multiply (XLU).
            rows = [y[n, k:k + 1, :] for k in range(d1)]

        # out[n] = sum_k y[k] * bcast(y[n, k, :])   -- y[k] is a free vreg slice.
        acc = y[0] * rows[0]
        for k in range(1, d1):
            acc = acc + y[k] * rows[k]
        out_ref[n] = acc.astype(out_ref.dtype)   # NOTE: last dim 8 -> vst.msk


def model_forward(x1, x2):
    # The x1 branch (x1 + 2 -> permute(2, 0, 1)) is dead code in the torch
    # module: its result never reaches the return value, so no kernel is
    # emitted for it.
    del x1

    d0, d1, d2 = x2.shape
    assert d0 == d1, "o2 @ o2 requires square per-batch matrices (D0 == D1)"

    # TODO(synk): torch's final o3.permute(2, 2, 0) repeats a dimension and
    # raises in PyTorch; implemented as the nearest valid permutation (2, 1, 0),
    # which is folded into the kernel's index algebra.
    return pl.pallas_call(
        _fused_forward_kernel,
        out_shape=jax.ShapeDtypeStruct((d0, d1, d2), x2.dtype),
        # Gridless: whole (2 KiB) arrays as single VMEM-resident operands --
        # no grid loop, no per-step overhead, no double-buffer allocation.
        in_specs=[pl.BlockSpec(memory_space=pltpu.VMEM)],
        out_specs=pl.BlockSpec(memory_space=pltpu.VMEM),
        scratch_shapes=[pltpu.VMEM((d0, d1, d2), jnp.float32)],
    )(x2)


if __name__ == "__main__":
    key = jax.random.PRNGKey(0)
    k1, k2 = jax.random.split(key)

    # The module's literal example shape x2=(5, 3, 2) makes `o2 @ o2`
    # ill-defined even in PyTorch; a small cube (8, 8, 8) is used (D0 == D1).
    x1 = jax.random.normal(k1, (2, 4, 3), dtype=jnp.float32)
    x2 = jax.random.normal(k2, (8, 8, 8), dtype=jnp.float32)

    fwd = jax.jit(model_forward)
    out = jax.block_until_ready(fwd(x1, x2))

    # Reference in plain JAX, mirroring the torch graph step by step.
    y = x2 - 3.0
    o2 = jnp.transpose(y, (2, 1, 0))
    o3 = jnp.einsum("bik,bkj->bij", o2, o2)
    ref = jnp.transpose(o3, (2, 1, 0))            # stand-in for permute(2, 2, 0)

    assert out.shape == ref.shape
    assert jnp.allclose(out, ref, atol=1e-4, rtol=1e-4)

    print("KERNEL_OK")
</pallas_src>

<mosaic_0001>
module attributes {stable_mosaic.version = 11 : i64} {
  func.func @_k(%arg0: memref<8x8x8xf32, #tpu.memory_space<vmem>>, %arg1: memref<8x8xf32, #tpu.memory_space<vmem>>) attributes {dimension_semantics = [], scalar_prefetch = 0 : i64, scratch_operands = 0 : i64, tpu.core_type = #tpu.core_type<tc>} {
    %c2 = arith.constant 2 : index
    %c3 = arith.constant 3 : index
    %c0 = arith.constant 0 : index
    %0 = tpu.strided_load %arg0[%c2, %c3, %c0] {strides = array<i32: 1, 0, 1>} : memref<8x8x8xf32, #tpu.memory_space<vmem>>, vector<1x8x8xf32>
    %1 = vector.shape_cast %0 : vector<1x8x8xf32> to vector<8x8xf32>
    %c0_0 = arith.constant 0 : index
    %c0_1 = arith.constant 0 : index
    %2 = vector.load %arg1[%c0_0, %c0_1] : memref<8x8xf32, #tpu.memory_space<vmem>>, vector<8x8xf32>
    tpu.vector_store %arg1[%c0_0, %c0_1], %1 {strides = array<i32>} : memref<8x8xf32, #tpu.memory_space<vmem>>, vector<8x8xf32>,
    return
  }
}

module attributes {stable_mosaic.version = 11 : i64} {
  func.func @_fused_forward_kernel(%arg0: memref<8x8x8xf32, #tpu.memory_space<vmem>>, %arg1: memref<8x8x8xf32, #tpu.memory_space<vmem>>, %arg2: memref<8x8x8xf32, #tpu.memory_space<vmem>>) attributes {dimension_semantics = [], scalar_prefetch = 0 : i64, scratch_operands = 1 : i64, tpu.core_type = #tpu.core_type<tc>} {
    %c0 = arith.constant 0 : index
    %c0_0 = arith.constant 0 : index
    %c0_1 = arith.constant 0 : index
    %0 = vector.load %arg0[%c0, %c0_0, %c0_1] : memref<8x8x8xf32, #tpu.memory_space<vmem>>, vector<8x8x8xf32>
    %cst = arith.constant 3.000000e+00 : f32
    %1 = vector.broadcast %cst : f32 to vector<8x8x8xf32>
    %2 = arith.subf %0, %1 : vector<8x8x8xf32>
    %3 = vector.extract_strided_slice %2 {offsets = [0, 0, 0], sizes = [1, 1, 8], strides = [1, 1, 1]} : vector<8x8x8xf32> to vector<1x1x8xf32>
    %4 = vector.shape_cast %3 : vector<1x1x8xf32> to vector<1x8xf32>
    %5 = vector.extract_strided_slice %2 {offsets = [0, 1, 0], sizes = [1, 1, 8], strides = [1, 1, 1]} : vector<8x8x8xf32> to vector<1x1x8xf32>
    %6 = vector.shape_cast %5 : vector<1x1x8xf32> to vector<1x8xf32>
    %7 = vector.extract_strided_slice %2 {offsets = [0, 2, 0], sizes = [1, 1, 8], strides = [1, 1, 1]} : vector<8x8x8xf32> to vector<1x1x8xf32>
    %8 = vector.shape_cast %7 : vector<1x1x8xf32> to vector<1x8xf32>
    %9 = vector.extract_strided_slice %2 {offsets = [0, 3, 0], sizes = [1, 1, 8], strides = [1, 1, 1]} : vector<8x8x8xf32> to vector<1x1x8xf32>
    %10 = vector.shape_cast %9 : vector<1x1x8xf32> to vector<1x8xf32>
    %11 = vector.extract_strided_slice %2 {offsets = [0, 4, 0], sizes = [1, 1, 8], strides = [1, 1, 1]} : vector<8x8x8xf32> to vector<1x1x8xf32>
    %12 = vector.shape_cast %11 : vector<1x1x8xf32> to vector<1x8xf32>
    %13 = vector.extract_strided_slice %2 {offsets = [0, 5, 0], sizes = [1, 1, 8], strides = [1, 1, 1]} : vector<8x8x8xf32> to vector<1x1x8xf32>
    %14 = vector.shape_cast %13 : vector<1x1x8xf32> to vector<1x8xf32>
    %15 = vector.extract_strided_slice %2 {offsets = [0, 6, 0], sizes = [1, 1, 8], strides = [1, 1, 1]} : vector<8x8x8xf32> to vector<1x1x8xf32>
    %16 = vector.shape_cast %15 : vector<1x1x8xf32> to vector<1x8xf32>
    %17 = vector.extract_strided_slice %2 {offsets = [0, 7, 0], sizes = [1, 1, 8], strides = [1, 1, 1]} : vector<8x8x8xf32> to vector<1x1x8xf32>
    %18 = vector.shape_cast %17 : vector<1x1x8xf32> to vector<1x8xf32>
    %19 = vector.extract_strided_slice %2 {offsets = [0, 0, 0], sizes = [1, 8, 8], strides = [1, 1, 1]} : vector<8x8x8xf32> to vector<1x8x8xf32>
    %20 = vector.shape_cast %19 : vector<1x8x8xf32> to vector<8x8xf32>
    %21 = vector.broadcast %4 : vector<1x8xf32> to vector<8x8xf32>
    %22 = arith.mulf %20, %21 : vector<8x8xf32>
    %23 = vector.extract_strided_slice %2 {offsets = [1, 0, 0], sizes = [1, 8, 8], strides = [1, 1, 1]} : vector<8x8x8xf32> to vector<1x8x8xf32>
    %24 = vector.shape_cast %23 : vector<1x8x8xf32> to vector<8x8xf32>
    %25 = vector.broadcast %6 : vector<1x8xf32> to vector<8x8xf32>
    %26 = arith.mulf %24, %25 : vector<8x8xf32>
    %27 = arith.addf %22, %26 : vector<8x8xf32>
    %28 = vector.extract_strided_slice %2 {offsets = [2, 0, 0], sizes = [1, 8, 8], strides = [1, 1, 1]} : vector<8x8x8xf32> to vector<1x8x8xf32>
    %29 = vector.shape_cast %28 : vector<1x8x8xf32> to vector<8x8xf32>
    %30 = vector.broadcast %8 : vector<1x8xf32> to vector<8x8xf32>
    %31 = arith.mulf %29, %30 : vector<8x8xf32>
    %32 = arith.addf %27, %31 : vector<8x8xf32>
    %33 = vector.extract_strided_slice %2 {offsets = [3, 0, 0], sizes = [1, 8, 8], strides = [1, 1, 1]} : vector<8x8x8xf32> to vector<1x8x8xf32>
    %34 = vector.shape_cast %33 : vector<1x8x8xf32> to vector<8x8xf32>
    %35 = vector.broadcast %10 : vector<1x8xf32> to vector<8x8xf32>
    %36 = arith.mulf %34, %35 : vector<8x8xf32>
    %37 = arith.addf %32, %36 : vector<8x8xf32>
    %38 = vector.extract_strided_slice %2 {offsets = [4, 0, 0], sizes = [1, 8, 8], strides = [1, 1, 1]} : vector<8x8x8xf32> to vector<1x8x8xf32>
    %39 = vector.shape_cast %38 : vector<1x8x8xf32> to vector<8x8xf32>
    %40 = vector.broadcast %12 : vector<1x8xf32> to vector<8x8xf32>
    %41 = arith.mulf %39, %40 : vector<8x8xf32>
    %42 = arith.addf %37, %41 : vector<8x8xf32>
    %43 = vector.extract_strided_slice %2 {offsets = [5, 0, 0], sizes = [1, 8, 8], strides = [1, 1, 1]} : vector<8x8x8xf32> to vector<1x8x8xf32>
    %44 = vector.shape_cast %43 : vector<1x8x8xf32> to vector<8x8xf32>
    %45 = vector.broadcast %14 : vector<1x8xf32> to vector<8x8xf32>
    %46 = arith.mulf %44, %45 : vector<8x8xf32>
    %47 = arith.addf %42, %46 : vector<8x8xf32>
    %48 = vector.extract_strided_slice %2 {offsets = [6, 0, 0], sizes = [1, 8, 8], strides = [1, 1, 1]} : vector<8x8x8xf32> to vector<1x8x8xf32>
    %49 = vector.shape_cast %48 : vector<1x8x8xf32> to vector<8x8xf32>
    %50 = vector.broadcast %16 : vector<1x8xf32> to vector<8x8xf32>
    %51 = arith.mulf %49, %50 : vector<8x8xf32>
    %52 = arith.addf %47, %51 : vector<8x8xf32>
    %53 = vector.extract_strided_slice %2 {offsets = [7, 0, 0], sizes = [1, 8, 8], strides = [1, 1, 1]} : vector<8x8x8xf32> to vector<1x8x8xf32>
    %54 = vector.shape_cast %53 : vector<1x8x8xf32> to vector<8x8xf32>
    %55 = vector.broadcast %18 : vector<1x8xf32> to vector<8x8xf32>
    %56 = arith.mulf %54, %55 : vector<8x8xf32>
    %57 = arith.addf %52, %56 : vector<8x8xf32>
    %c0_2 = arith.constant 0 : index
    %c0_3 = arith.constant 0 : index
    %c0_4 = arith.constant 0 : index
    %58 = vector.load %arg1[%c0_2, %c0_3, %c0_4] : memref<8x8x8xf32, #tpu.memory_space<vmem>>, vector<1x8x8xf32>
    %59 = vector.shape_cast %58 : vector<1x8x8xf32> to vector<8x8xf32>
    %60 = vector.shape_cast %57 : vector<8x8xf32> to vector<1x8x8xf32>
    tpu.vector_store %arg1[%c0_2, %c0_3, %c0_4], %60 {strides = array<i32>} : memref<8x8x8xf32, #tpu.memory_space<vmem>>, vector<1x8x8xf32>,
    %61 = vector.extract_strided_slice %2 {offsets = [1, 0, 0], sizes = [1, 1, 8], strides = [1, 1, 1]} : vector<8x8x8xf32> to vector<1x1x8xf32>
    %62 = vector.shape_cast %61 : vector<1x1x8xf32> to vector<1x8xf32>
    %63 = vector.extract_strided_slice %2 {offsets = [1, 1, 0], sizes = [1, 1, 8], strides = [1, 1, 1]} : vector<8x8x8xf32> to vector<1x1x8xf32>
    %64 = vector.shape_cast %63 : vector<1x1x8xf32> to vector<1x8xf32>
    %65 = vector.extract_strided_slice %2 {offsets = [1, 2, 0], sizes = [1, 1, 8], strides = [1, 1, 1]} : vector<8x8x8xf32> to vector<1x1x8xf32>
    %66 = vector.shape_cast %65 : vector<1x1x8xf32> to vector<1x8xf32>
    %67 = vector.extract_strided_slice %2 {offsets = [1, 3, 0], sizes = [1, 1, 8], strides = [1, 1, 1]} : vector<8x8x8xf32> to vector<1x1x8xf32>
    %68 = vector.shape_cast %67 : vector<1x1x8xf32> to vector<1x8xf32>
    %69 = vector.extract_strided_slice %2 {offsets = [1, 4, 0], sizes = [1, 1, 8], strides = [1, 1, 1]} : vector<8x8x8xf32> to vector<1x1x8xf32>
    %70 = vector.shape_cast %69 : vector<1x1x8xf32> to vector<1x8xf32>
    %71 = vector.extract_strided_slice %2 {offsets = [1, 5, 0], sizes = [1, 1, 8], strides = [1, 1, 1]} : vector<8x8x8xf32> to vector<1x1x8xf32>
    %72 = vector.shape_cast %71 : vector<1x1x8xf32> to vector<1x8xf32>
    %73 = vector.extract_strided_slice %2 {offsets = [1, 6, 0], sizes = [1, 1, 8], strides = [1, 1, 1]} : vector<8x8x8xf32> to vector<1x1x8xf32>
    %74 = vector.shape_cast %73 : vector<1x1x8xf32> to vector<1x8xf32>
    %75 = vector.extract_strided_slice %2 {offsets = [1, 7, 0], sizes = [1, 1, 8], strides = [1, 1, 1]} : vector<8x8x8xf32> to vector<1x1x8xf32>
    %76 = vector.shape_cast %75 : vector<1x1x8xf32> to vector<1x8xf32>
    %77 = vector.extract_strided_slice %2 {offsets = [0, 0, 0], sizes = [1, 8, 8], strides = [1, 1, 1]} : vector<8x8x8xf32> to vector<1x8x8xf32>
    %78 = vector.shape_cast %77 : vector<1x8x8xf32> to vector<8x8xf32>
    %79 = vector.broadcast %62 : vector<1x8xf32> to vector<8x8xf32>
    %80 = arith.mulf %78, %79 : vector<8x8xf32>
    %81 = vector.extract_strided_slice %2 {offsets = [1, 0, 0], sizes = [1, 8, 8], strides = [1, 1, 1]} : vector<8x8x8xf32> to vector<1x8x8xf32>
    %82 = vector.shape_cast %81 : vector<1x8x8xf32> to vector<8x8xf32>
    %83 = vector.broadcast %64 : vector<1x8xf32> to vector<8x8xf32>
    %84 = arith.mulf %82, %83 : vector<8x8xf32>
    %85 = arith.addf %80, %84 : vector<8x8xf32>
    %86 = vector.extract_strided_slice %2 {offsets = [2, 0, 0], sizes = [1, 8, 8], strides = [1, 1, 1]} : vector<8x8x8xf32> to vector<1x8x8xf32>
    %87 = vector.shape_cast %86 : vector<1x8x8xf32> to vector<8x8xf32>
    %88 = vector.broadcast %66 : vector<1x8xf32> to vector<8x8xf32>
    %89 = arith.mulf %87, %88 : vector<8x8xf32>
    %90 = arith.addf %85, %89 : vector<8x8xf32>
    %91 = vector.extract_strided_slice %2 {offsets = [3, 0, 0], sizes = [1, 8, 8], strides = [1, 1, 1]} : vector<8x8x8xf32> to vector<1x8x8xf32>
    %92 = vector.shape_cast %91 : vector<1x8x8xf32> to vector<8x8xf32>
    %93 = vector.broadcast %68 : vector<1x8xf32> to vector<8x8xf32>
    %94 = arith.mulf %92, %93 : vector<8x8xf32>
    %95 = arith.addf %90, %94 : vector<8x8xf32>
    %96 = vector.extract_strided_slice %2 {offsets = [4, 0, 0], sizes = [1, 8, 8], strides = [1, 1, 1]} : vector<8x8x8xf32> to vector<1x8x8xf32>
    %97 = vector.shape_cast %96 : vector<1x8x8xf32> to vector<8x8xf32>
    %98 = vector.broadcast %70 : vector<1x8xf32> to vector<8x8xf32>
    %99 = arith.mulf %97, %98 : vector<8x8xf32>
    %100 = arith.addf %95, %99 : vector<8x8xf32>
    %101 = vector.extract_strided_slice %2 {offsets = [5, 0, 0], sizes = [1, 8, 8], strides = [1, 1, 1]} : vector<8x8x8xf32> to vector<1x8x8xf32>
    %102 = vector.shape_cast %101 : vector<1x8x8xf32> to vector<8x8xf32>
    %103 = vector.broadcast %72 : vector<1x8xf32> to vector<8x8xf32>
    %104 = arith.mulf %102, %103 : vector<8x8xf32>
    %105 = arith.addf %100, %104 : vector<8x8xf32>
    %106 = vector.extract_strided_slice %2 {offsets = [6, 0, 0], sizes = [1, 8, 8], strides = [1, 1, 1]} : vector<8x8x8xf32> to vector<1x8x8xf32>
    %107 = vector.shape_cast %106 : vector<1x8x8xf32> to vector<8x8xf32>
    %108 = vector.broadcast %74 : vector<1x8xf32> to vector<8x8xf32>
    %109 = arith.mulf %107, %108 : vector<8x8xf32>
    %110 = arith.addf %105, %109 : vector<8x8xf32>
    %111 = vector.extract_strided_slice %2 {offsets = [7, 0, 0], sizes = [1, 8, 8], strides = [1, 1, 1]} : vector<8x8x8xf32> to vector<1x8x8xf32>
    %112 = vector.shape_cast %111 : vector<1x8x8xf32> to vector<8x8xf32>
    %113 = vector.broadcast %76 : vector<1x8xf32> to vector<8x8xf32>
    %114 = arith.mulf %112, %113 : vector<8x8xf32>
    %115 = arith.addf %110, %114 : vector<8x8xf32>
    %c1 = arith.constant 1 : index
    %c0_5 = arith.constant 0 : index
    %c0_6 = arith.constant 0 : index
    %116 = vector.load %arg1[%c1, %c0_5, %c0_6] : memref<8x8x8xf32, #tpu.memory_space<vmem>>, vector<1x8x8xf32>
    %117 = vector.shape_cast %116 : vector<1x8x8xf32> to vector<8x8xf32>
    %118 = vector.shape_cast %115 : vector<8x8xf32> to vector<1x8x8xf32>
    tpu.vector_store %arg1[%c1, %c0_5, %c0_6], %118 {strides = array<i32>} : memref<8x8x8xf32, #tpu.memory_space<vmem>>, vector<1x8x8xf32>,
    %119 = vector.extract_strided_slice %2 {offsets = [2, 0, 0], sizes = [1, 1, 8], strides = [1, 1, 1]} : vector<8x8x8xf32> to vector<1x1x8xf32>
    %120 = vector.shape_cast %119 : vector<1x1x8xf32> to vector<1x8xf32>
    %121 = vector.extract_strided_slice %2 {offsets = [2, 1, 0], sizes = [1, 1, 8], strides = [1, 1, 1]} : vector<8x8x8xf32> to vector<1x1x8xf32>
    %122 = vector.shape_cast %121 : vector<1x1x8xf32> to vector<1x8xf32>
    %123 = vector.extract_strided_slice %2 {offsets = [2, 2, 0], sizes = [1, 1, 8], strides = [1, 1, 1]} : vector<8x8x8xf32> to vector<1x1x8xf32>
    %124 = vector.shape_cast %123 : vector<1x1x8xf32> to vector<1x8xf32>
    %125 = vector.extract_strided_slice %2 {offsets = [2, 3, 0], sizes = [1, 1, 8], strides = [1, 1, 1]} : vector<8x8x8xf32> to vector<1x1x8xf32>
    %126 = vector.shape_cast %125 : vector<1x1x8xf32> to vector<1x8xf32>
    %127 = vector.extract_strided_slice %2 {offsets = [2, 4, 0], sizes = [1, 1, 8], strides = [1, 1, 1]} : vector<8x8x8xf32> to vector<1x1x8xf32>
    %128 = vector.shape_cast %127 : vector<1x1x8xf32> to vector<1x8xf32>
    %129 = vector.extract_strided_slice %2 {offsets = [2, 5, 0], sizes = [1, 1, 8], strides = [1, 1, 1]} : vector<8x8x8xf32> to vector<1x1x8xf32>
    %130 = vector.shape_cast %129 : vector<1x1x8xf32> to vector<1x8xf32>
    %131 = vector.extract_strided_slice %2 {offsets = [2, 6, 0], sizes = [1, 1, 8], strides = [1, 1, 1]} : vector<8x8x8xf32> to vector<1x1x8xf32>
    %132 = vector.shape_cast %131 : vector<1x1x8xf32> to vector<1x8xf32>
    %133 = vector.extract_strided_slice %2 {offsets = [2, 7, 0], sizes = [1, 1, 8], strides = [1, 1, 1]} : vector<8x8x8xf32> to vector<1x1x8xf32>
    %134 = vector.shape_cast %133 : vector<1x1x8xf32> to vector<1x8xf32>
    %135 = vector.extract_strided_slice %2 {offsets = [0, 0, 0], sizes = [1, 8, 8], strides = [1, 1, 1]} : vector<8x8x8xf32> to vector<1x8x8xf32>
    %136 = vector.shape_cast %135 : vector<1x8x8xf32> to vector<8x8xf32>
    %137 = vector.broadcast %120 : vector<1x8xf32> to vector<8x8xf32>
    %138 = arith.mulf %136, %137 : vector<8x8xf32>
    %139 = vector.extract_strided_slice %2 {offsets = [1, 0, 0], sizes = [1, 8, 8], strides = [1, 1, 1]} : vector<8x8x8xf32> to vector<1x8x8xf32>
    %140 = vector.shape_cast %139 : vector<1x8x8xf32> to vector<8x8xf32>
    %141 = vector.broadcast %122 : vector<1x8xf32> to vector<8x8xf32>
    %142 = arith.mulf %140, %141 : vector<8x8xf32>
    %143 = arith.addf %138, %142 : vector<8x8xf32>
    %144 = vector.extract_strided_slice %2 {offsets = [2, 0, 0], sizes = [1, 8, 8], strides = [1, 1, 1]} : vector<8x8x8xf32> to vector<1x8x8xf32>
    %145 = vector.shape_cast %144 : vector<1x8x8xf32> to vector<8x8xf32>
    %146 = vector.broadcast %124 : vector<1x8xf32> to vector<8x8xf32>
    %147 = arith.mulf %145, %146 : vector<8x8xf32>
    %148 = arith.addf %143, %147 : vector<8x8xf32>
    %149 = vector.extract_strided_slice %2 {offsets = [3, 0, 0], sizes = [1, 8, 8], strides = [1, 1, 1]} : vector<8x8x8xf32> to vector<1x8x8xf32>
    %150 = vector.shape_cast %149 : vector<1x8x8xf32> to vector<8x8xf32>
    %151 = vector.broadcast %126 : vector<1x8xf32> to vector<8x8xf32>
    %152 = arith.mulf %150, %151 : vector<8x8xf32>
    %153 = arith.addf %148, %152 : vector<8x8xf32>
    %154 = vector.extract_strided_slice %2 {offsets = [4, 0, 0], sizes = [1, 8, 8], strides = [1, 1, 1]} : vector<8x8x8xf32> to vector<1x8x8xf32>
    %155 = vector.shape_cast %154 : vector<1x8x8xf32> to vector<8x8xf32>
    %156 = vector.broadcast %128 : vector<1x8xf32> to vector<8x8xf32>
    %157 = arith.mulf %155, %156 : vector<8x8xf32>
    %158 = arith.addf %153, %157 : vector<8x8xf32>
    %159 = vector.extract_strided_slice %2 {offsets = [5, 0, 0], sizes = [1, 8, 8], strides = [1, 1, 1]} : vector<8x8x8xf32> to vector<1x8x8xf32>
    %160 = vector.shape_cast %159 : vector<1x8x8xf32> to vector<8x8xf32>
    %161 = vector.broadcast %130 : vector<1x8xf32> to vector<8x8xf32>
    %162 = arith.mulf %160, %161 : vector<8x8xf32>
    %163 = arith.addf %158, %162 : vector<8x8xf32>
    %164 = vector.extract_strided_slice %2 {offsets = [6, 0, 0], sizes = [1, 8, 8], strides = [1, 1, 1]} : vector<8x8x8xf32> to vector<1x8x8xf32>
    %165 = vector.shape_cast %164 : vector<1x8x8xf32> to vector<8x8xf32>
    %166 = vector.broadcast %132 : vector<1x8xf32> to vector<8x8xf32>
    %167 = arith.mulf %165, %166 : vector<8x8xf32>
    %168 = arith.addf %163, %167 : vector<8x8xf32>
    %169 = vector.extract_strided_slice %2 {offsets = [7, 0, 0], sizes = [1, 8, 8], strides = [1, 1, 1]} : vector<8x8x8xf32> to vector<1x8x8xf32>
    %170 = vector.shape_cast %169 : vector<1x8x8xf32> to vector<8x8xf32>
    %171 = vector.broadcast %134 : vector<1x8xf32> to vector<8x8xf32>
    %172 = arith.mulf %170, %171 : vector<8x8xf32>
    %173 = arith.addf %168, %172 : vector<8x8xf32>
    %c2 = arith.constant 2 : index
    %c0_7 = arith.constant 0 : index
    %c0_8 = arith.constant 0 : index
    %174 = vector.load %arg1[%c2, %c0_7, %c0_8] : memref<8x8x8xf32, #tpu.memory_space<vmem>>, vector<1x8x8xf32>
    %175 = vector.shape_cast %174 : vector<1x8x8xf32> to vector<8x8xf32>
    %176 = vector.shape_cast %173 : vector<8x8xf32> to vector<1x8x8xf32>
    tpu.vector_store %arg1[%c2, %c0_7, %c0_8], %176 {strides = array<i32>} : memref<8x8x8xf32, #tpu.memory_space<vmem>>, vector<1x8x8xf32>,
    %177 = vector.extract_strided_slice %2 {offsets = [3, 0, 0], sizes = [1, 1, 8], strides = [1, 1, 1]} : vector<8x8x8xf32> to vector<1x1x8xf32>
    %178 = vector.shape_cast %177 : vector<1x1x8xf32> to vector<1x8xf32>
    %179 = vector.extract_strided_slice %2 {offsets = [3, 1, 0], sizes = [1, 1, 8], strides = [1, 1, 1]} : vector<8x8x8xf32> to vector<1x1x8xf32>
    %180 = vector.shape_cast %179 : vector<1x1x8xf32> to vector<1x8xf32>
    %181 = vector.extract_strided_slice %2 {offsets = [3, 2, 0], sizes = [1, 1, 8], strides = [1, 1, 1]} : vector<8x8x8xf32> to vector<1x1x8xf32>
    %182 = vector.shape_cast %181 : vector<1x1x8xf32> to vector<1x8xf32>
    %183 = vector.extract_strided_slice %2 {offsets = [3, 3, 0], sizes = [1, 1, 8], strides = [1, 1, 1]} : vector<8x8x8xf32> to vector<1x1x8xf32>
    %184 = vector.shape_cast %183 : vector<1x1x8xf32> to vector<1x8xf32>
    %185 = vector.extract_strided_slice %2 {offsets = [3, 4, 0], sizes = [1, 1, 8], strides = [1, 1, 1]} : vector<8x8x8xf32> to vector<1x1x8xf32>
    %186 = vector.shape_cast %185 : vector<1x1x8xf32> to vector<1x8xf32>
    %187 = vector.extract_strided_slice %2 {offsets = [3, 5, 0], sizes = [1, 1, 8], strides = [1, 1, 1]} : vector<8x8x8xf32> to vector<1x1x8xf32>
    %188 = vector.shape_cast %187 : vector<1x1x8xf32> to vector<1x8xf32>
    %189 = vector.extract_strided_slice %2 {offsets = [3, 6, 0], sizes = [1, 1, 8], strides = [1, 1, 1]} : vector<8x8x8xf32> to vector<1x1x8xf32>
    %190 = vector.shape_cast %189 : vector<1x1x8xf32> to vector<1x8xf32>
    %191 = vector.extract_strided_slice %2 {offsets = [3, 7, 0], sizes = [1, 1, 8], strides = [1, 1, 1]} : vector<8x8x8xf32> to vector<1x1x8xf32>
    %192 = vector.shape_cast %191 : vector<1x1x8xf32> to vector<1x8xf32>
    %193 = vector.extract_strided_slice %2 {offsets = [0, 0, 0], sizes = [1, 8, 8], strides = [1, 1, 1]} : vector<8x8x8xf32> to vector<1x8x8xf32>
    %194 = vector.shape_cast %193 : vector<1x8x8xf32> to vector<8x8xf32>
    %195 = vector.broadcast %178 : vector<1x8xf32> to vector<8x8xf32>
    %196 = arith.mulf %194, %195 : vector<8x8xf32>
    %197 = vector.extract_strided_slice %2 {offsets = [1, 0, 0], sizes = [1, 8, 8], strides = [1, 1, 1]} : vector<8x8x8xf32> to vector<1x8x8xf32>
    %198 = vector.shape_cast %197 : vector<1x8x8xf32> to vector<8x8xf32>
    %199 = vector.broadcast %180 : vector<1x8xf32> to vector<8x8xf32>
    %200 = arith.mulf %198, %199 : vector<8x8xf32>
    %201 = arith.addf %196, %200 : vector<8x8xf32>
    %202 = vector.extract_strided_slice %2 {offsets = [2, 0, 0], sizes = [1, 8, 8], strides = [1, 1, 1]} : vector<8x8x8xf32> to vector<1x8x8xf32>
    %203 = vector.shape_cast %202 : vector<1x8x8xf32> to vector<8x8xf32>
    %204 = vector.broadcast %182 : vector<1x8xf32> to vector<8x8xf32>
    %205 = arith.mulf %203, %204 : vector<8x8xf32>
    %206 = arith.addf %201, %205 : vector<8x8xf32>
    %207 = vector.extract_strided_slice %2 {offsets = [3, 0, 0], sizes = [1, 8, 8], strides = [1, 1, 1]} : vector<8x8x8xf32> to vector<1x8x8xf32>
    %208 = vector.shape_cast %207 : vector<1x8x8xf32> to vector<8x8xf32>
    %209 = vector.broadcast %184 : vector<1x8xf32> to vector<8x8xf32>
    %210 = arith.mulf %208, %209 : vector<8x8xf32>
    %211 = arith.addf %206, %210 : vector<8x8xf32>
    %212 = vector.extract_strided_slice %2 {offsets = [4, 0, 0], sizes = [1, 8, 8], strides = [1, 1, 1]} : vector<8x8x8xf32> to vector<1x8x8xf32>
    %213 = vector.shape_cast %212 : vector<1x8x8xf32> to vector<8x8xf32>
    %214 = vector.broadcast %186 : vector<1x8xf32> to vector<8x8xf32>
    %215 = arith.mulf %213, %214 : vector<8x8xf32>
    %216 = arith.addf %211, %215 : vector<8x8xf32>
    %217 = vector.extract_strided_slice %2 {offsets = [5, 0, 0], sizes = [1, 8, 8], strides = [1, 1, 1]} : vector<8x8x8xf32> to vector<1x8x8xf32>
    %218 = vector.shape_cast %217 : vector<1x8x8xf32> to vector<8x8xf32>
    %219 = vector.broadcast %188 : vector<1x8xf32> to vector<8x8xf32>
    %220 = arith.mulf %218, %219 : vector<8x8xf32>
    %221 = arith.addf %216, %220 : vector<8x8xf32>
    %222 = vector.extract_strided_slice %2 {offsets = [6, 0, 0], sizes = [1, 8, 8], strides = [1, 1, 1]} : vector<8x8x8xf32> to vector<1x8x8xf32>
    %223 = vector.shape_cast %222 : vector<1x8x8xf32> to vector<8x8xf32>
    %224 = vector.broadcast %190 : vector<1x8xf32> to vector<8x8xf32>
    %225 = arith.mulf %223, %224 : vector<8x8xf32>
    %226 = arith.addf %221, %225 : vector<8x8xf32>
    %227 = vector.extract_strided_slice %2 {offsets = [7, 0, 0], sizes = [1, 8, 8], strides = [1, 1, 1]} : vector<8x8x8xf32> to vector<1x8x8xf32>
    %228 = vector.shape_cast %227 : vector<1x8x8xf32> to vector<8x8xf32>
    %229 = vector.broadcast %192 : vector<1x8xf32> to vector<8x8xf32>
    %230 = arith.mulf %228, %229 : vector<8x8xf32>
    %231 = arith.addf %226, %230 : vector<8x8xf32>
    %c3 = arith.constant 3 : index
    %c0_9 = arith.constant 0 : index
    %c0_10 = arith.constant 0 : index
    %232 = vector.load %arg1[%c3, %c0_9, %c0_10] : memref<8x8x8xf32, #tpu.memory_space<vmem>>, vector<1x8x8xf32>
    %233 = vector.shape_cast %232 : vector<1x8x8xf32> to vector<8x8xf32>
    %234 = vector.shape_cast %231 : vector<8x8xf32> to vector<1x8x8xf32>
    tpu.vector_store %arg1[%c3, %c0_9, %c0_10], %234 {strides = array<i32>} : memref<8x8x8xf32, #tpu.memory_space<vmem>>, vector<1x8x8xf32>,
    %235 = vector.extract_strided_slice %2 {offsets = [4, 0, 0], sizes = [1, 1, 8], strides = [1, 1, 1]} : vector<8x8x8xf32> to vector<1x1x8xf32>
    %236 = vector.shape_cast %235 : vector<1x1x8xf32> to vector<1x8xf32>
    %237 = vector.extract_strided_slice %2 {offsets = [4, 1, 0], sizes = [1, 1, 8], strides = [1, 1, 1]} : vector<8x8x8xf32> to vector<1x1x8xf32>
    %238 = vector.shape_cast %237 : vector<1x1x8xf32> to vector<1x8xf32>
    %239 = vector.extract_strided_slice %2 {offsets = [4, 2, 0], sizes = [1, 1, 8], strides = [1, 1, 1]} : vector<8x8x8xf32> to vector<1x1x8xf32>
    %240 = vector.shape_cast %239 : vector<1x1x8xf32> to vector<1x8xf32>
    %241 = vector.extract_strided_slice %2 {offsets = [4, 3, 0], sizes = [1, 1, 8], strides = [1, 1, 1]} : vector<8x8x8xf32> to vector<1x1x8xf32>
    %242 = vector.shape_cast %241 : vector<1x1x8xf32> to vector<1x8xf32>
    %243 = vector.extract_strided_slice %2 {offsets = [4, 4, 0], sizes = [1, 1, 8], strides = [1, 1, 1]} : vector<8x8x8xf32> to vector<1x1x8xf32>
    %244 = vector.shape_cast %243 : vector<1x1x8xf32> to vector<1x8xf32>
    %245 = vector.extract_strided_slice %2 {offsets = [4, 5, 0], sizes = [1, 1, 8], strides = [1, 1, 1]} : vector<8x8x8xf32> to vector<1x1x8xf32>
    %246 = vector.shape_cast %245 : vector<1x1x8xf32> to vector<1x8xf32>
    %247 = vector.extract_strided_slice %2 {offsets = [4, 6, 0], sizes = [1, 1, 8], strides = [1, 1, 1]} : vector<8x8x8xf32> to vector<1x1x8xf32>
    %248 = vector.shape_cast %247 : vector<1x1x8xf32> to vector<1x8xf32>
    %249 = vector.extract_strided_slice %2 {offsets = [4, 7, 0], sizes = [1, 1, 8], strides = [1, 1, 1]} : vector<8x8x8xf32> to vector<1x1x8xf32>
    %250 = vector.shape_cast %249 : vector<1x1x8xf32> to vector<1x8xf32>
    %251 = vector.extract_strided_slice %2 {offsets = [0, 0, 0], sizes = [1, 8, 8], strides = [1, 1, 1]} : vector<8x8x8xf32> to vector<1x8x8xf32>
    %252 = vector.shape_cast %251 : vector<1x8x8xf32> to vector<8x8xf32>
    %253 = vector.broadcast %236 : vector<1x8xf32> to vector<8x8xf32>
    %254 = arith.mulf %252, %253 : vector<8x8xf32>
    %255 = vector.extract_strided_slice %2 {offsets = [1, 0, 0], sizes = [1, 8, 8], strides = [1, 1, 1]} : vector<8x8x8xf32> to vector<1x8x8xf32>
    %256 = vector.shape_cast %255 : vector<1x8x8xf32> to vector<8x8xf32>
    %257 = vector.broadcast %238 : vector<1x8xf32> to vector<8x8xf32>
    %258 = arith.mulf %256, %257 : vector<8x8xf32>
    %259 = arith.addf %254, %258 : vector<8x8xf32>
    %260 = vector.extract_strided_slice %2 {offsets = [2, 0, 0], sizes = [1, 8, 8], strides = [1, 1, 1]} : vector<8x8x8xf32> to vector<1x8x8xf32>
    %261 = vector.shape_cast %260 : vector<1x8x8xf32> to vector<8x8xf32>
    %262 = vector.broadcast %240 : vector<1x8xf32> to vector<8x8xf32>
    %263 = arith.mulf %261, %262 : vector<8x8xf32>
    %264 = arith.addf %259, %263 : vector<8x8xf32>
    %265 = vector.extract_strided_slice %2 {offsets = [3, 0, 0], sizes = [1, 8, 8], strides = [1, 1, 1]} : vector<8x8x8xf32> to vector<1x8x8xf32>
    %266 = vector.shape_cast %265 : vector<1x8x8xf32> to vector<8x8xf32>
    %267 = vector.broadcast %242 : vector<1x8xf32> to vector<8x8xf32>
    %268 = arith.mulf %266, %267 : vector<8x8xf32>
    %269 = arith.addf %264, %268 : vector<8x8xf32>
    %270 = vector.extract_strided_slice %2 {offsets = [4, 0, 0], sizes = [1, 8, 8], strides = [1, 1, 1]} : vector<8x8x8xf32> to vector<1x8x8xf32>
    %271 = vector.shape_cast %270 : vector<1x8x8xf32> to vector<8x8xf32>
    %272 = vector.broadcast %244 : vector<1x8xf32> to vector<8x8xf32>
    %273 = arith.mulf %271, %272 : vector<8x8xf32>
    %274 = arith.addf %269, %273 : vector<8x8xf32>
    %275 = vector.extract_strided_slice %2 {offsets = [5, 0, 0], sizes = [1, 8, 8], strides = [1, 1, 1]} : vector<8x8x8xf32> to vector<1x8x8xf32>
    %276 = vector.shape_cast %275 : vector<1x8x8xf32> to vector<8x8xf32>
    %277 = vector.broadcast %246 : vector<1x8xf32> to vector<8x8xf32>
    %278 = arith.mulf %276, %277 : vector<8x8xf32>
    %279 = arith.addf %274, %278 : vector<8x8xf32>
    %280 = vector.extract_strided_slice %2 {offsets = [6, 0, 0], sizes = [1, 8, 8], strides = [1, 1, 1]} : vector<8x8x8xf32> to vector<1x8x8xf32>
    %281 = vector.shape_cast %280 : vector<1x8x8xf32> to vector<8x8xf32>
    %282 = vector.broadcast %248 : vector<1x8xf32> to vector<8x8xf32>
    %283 = arith.mulf %281, %282 : vector<8x8xf32>
    %284 = arith.addf %279, %283 : vector<8x8xf32>
    %285 = vector.extract_strided_slice %2 {offsets = [7, 0, 0], sizes = [1, 8, 8], strides = [1, 1, 1]} : vector<8x8x8xf32> to vector<1x8x8xf32>
    %286 = vector.shape_cast %285 : vector<1x8x8xf32> to vector<8x8xf32>
    %287 = vector.broadcast %250 : vector<1x8xf32> to vector<8x8xf32>
    %288 = arith.mulf %286, %287 : vector<8x8xf32>
    %289 = arith.addf %284, %288 : vector<8x8xf32>
    %c4 = arith.constant 4 : index
    %c0_11 = arith.constant 0 : index
    %c0_12 = arith.constant 0 : index
    %290 = vector.load %arg1[%c4, %c0_11, %c0_12] : memref<8x8x8xf32, #tpu.memory_space<vmem>>, vector<1x8x8xf32>
    %291 = vector.shape_cast %290 : vector<1x8x8xf32> to vector<8x8xf32>
    %292 = vector.shape_cast %289 : vector<8x8xf32> to vector<1x8x8xf32>
    tpu.vector_store %arg1[%c4, %c0_11, %c0_12], %292 {strides = array<i32>} : memref<8x8x8xf32, #tpu.memory_space<vmem>>, vector<1x8x8xf32>,
    %293 = vector.extract_strided_slice %2 {offsets = [5, 0, 0], sizes = [1, 1, 8], strides = [1, 1, 1]} : vector<8x8x8xf32> to vector<1x1x8xf32>
    %294 = vector.shape_cast %293 : vector<1x1x8xf32> to vector<1x8xf32>
    %295 = vector.extract_strided_slice %2 {offsets = [5, 1, 0], sizes = [1, 1, 8], strides = [1, 1, 1]} : vector<8x8x8xf32> to vector<1x1x8xf32>
    %296 = vector.shape_cast %295 : vector<1x1x8xf32> to vector<1x8xf32>
    %297 = vector.extract_strided_slice %2 {offsets = [5, 2, 0], sizes = [1, 1, 8], strides = [1, 1, 1]} : vector<8x8x8xf32> to vector<1x1x8xf32>
    %298 = vector.shape_cast %297 : vector<1x1x8xf32> to vector<1x8xf32>
    %299 = vector.extract_strided_slice %2 {offsets = [5, 3, 0], sizes = [1, 1, 8], strides = [1, 1, 1]} : vector<8x8x8xf32> to vector<1x1x8xf32>
    %300 = vector.shape_cast %299 : vector<1x1x8xf32> to vector<1x8xf32>
    %301 = vector.extract_strided_slice %2 {offsets = [5, 4, 0], sizes = [1, 1, 8], strides = [1, 1, 1]} : vector<8x8x8xf32> to vector<1x1x8xf32>
    %302 = vector.shape_cast %301 : vector<1x1x8xf32> to vector<1x8xf32>
    %303 = vector.extract_strided_slice %2 {offsets = [5, 5, 0], sizes = [1, 1, 8], strides = [1, 1, 1]} : vector<8x8x8xf32> to vector<1x1x8xf32>
    %304 = vector.shape_cast %303 : vector<1x1x8xf32> to vector<1x8xf32>
    %305 = vector.extract_strided_slice %2 {offsets = [5, 6, 0], sizes = [1, 1, 8], strides = [1, 1, 1]} : vector<8x8x8xf32> to vector<1x1x8xf32>
    %306 = vector.shape_cast %305 : vector<1x1x8xf32> to vector<1x8xf32>
    %307 = vector.extract_strided_slice %2 {offsets = [5, 7, 0], sizes = [1, 1, 8], strides = [1, 1, 1]} : vector<8x8x8xf32> to vector<1x1x8xf32>
    %308 = vector.shape_cast %307 : vector<1x1x8xf32> to vector<1x8xf32>
    %309 = vector.extract_strided_slice %2 {offsets = [0, 0, 0], sizes = [1, 8, 8], strides = [1, 1, 1]} : vector<8x8x8xf32> to vector<1x8x8xf32>
    %310 = vector.shape_cast %309 : vector<1x8x8xf32> to vector<8x8xf32>
    %311 = vector.broadcast %294 : vector<1x8xf32> to vector<8x8xf32>
    %312 = arith.mulf %310, %311 : vector<8x8xf32>
    %313 = vector.extract_strided_slice %2 {offsets = [1, 0, 0], sizes = [1, 8, 8], strides = [1, 1, 1]} : vector<8x8x8xf32> to vector<1x8x8xf32>
    %314 = vector.shape_cast %313 : vector<1x8x8xf32> to vector<8x8xf32>
    %315 = vector.broadcast %296 : vector<1x8xf32> to vector<8x8xf32>
    %316 = arith.mulf %314, %315 : vector<8x8xf32>
    %317 = arith.addf %312, %316 : vector<8x8xf32>
    %318 = vector.extract_strided_slice %2 {offsets = [2, 0, 0], sizes = [1, 8, 8], strides = [1, 1, 1]} : vector<8x8x8xf32> to vector<1x8x8xf32>
    %319 = vector.shape_cast %318 : vector<1x8x8xf32> to vector<8x8xf32>
    %320 = vector.broadcast %298 : vector<1x8xf32> to vector<8x8xf32>
    %321 = arith.mulf %319, %320 : vector<8x8xf32>
    %322 = arith.addf %317, %321 : vector<8x8xf32>
    %323 = vector.extract_strided_slice %2 {offsets = [3, 0, 0], sizes = [1, 8, 8], strides = [1, 1, 1]} : vector<8x8x8xf32> to vector<1x8x8xf32>
    %324 = vector.shape_cast %323 : vector<1x8x8xf32> to vector<8x8xf32>
    %325 = vector.broadcast %300 : vector<1x8xf32> to vector<8x8xf32>
    %326 = arith.mulf %324, %325 : vector<8x8xf32>
    %327 = arith.addf %322, %326 : vector<8x8xf32>
    %328 = vector.extract_strided_slice %2 {offsets = [4, 0, 0], sizes = [1, 8, 8], strides = [1, 1, 1]} : vector<8x8x8xf32> to vector<1x8x8xf32>
    %329 = vector.shape_cast %328 : vector<1x8x8xf32> to vector<8x8xf32>
    %330 = vector.broadcast %302 : vector<1x8xf32> to vector<8x8xf32>
    %331 = arith.mulf %329, %330 : vector<8x8xf32>
    %332 = arith.addf %327, %331 : vector<8x8xf32>
    %333 = vector.extract_strided_slice %2 {offsets = [5, 0, 0], sizes = [1, 8, 8], strides = [1, 1, 1]} : vector<8x8x8xf32> to vector<1x8x8xf32>
    %334 = vector.shape_cast %333 : vector<1x8x8xf32> to vector<8x8xf32>
    %335 = vector.broadcast %304 : vector<1x8xf32> to vector<8x8xf32>
    %336 = arith.mulf %334, %335 : vector<8x8xf32>
    %337 = arith.addf %332, %336 : vector<8x8xf32>
    %338 = vector.extract_strided_slice %2 {offsets = [6, 0, 0], sizes = [1, 8, 8], strides = [1, 1, 1]} : vector<8x8x8xf32> to vector<1x8x8xf32>
    %339 = vector.shape_cast %338 : vector<1x8x8xf32> to vector<8x8xf32>
    %340 = vector.broadcast %306 : vector<1x8xf32> to vector<8x8xf32>
    %341 = arith.mulf %339, %340 : vector<8x8xf32>
    %342 = arith.addf %337, %341 : vector<8x8xf32>
    %343 = vector.extract_strided_slice %2 {offsets = [7, 0, 0], sizes = [1, 8, 8], strides = [1, 1, 1]} : vector<8x8x8xf32> to vector<1x8x8xf32>
    %344 = vector.shape_cast %343 : vector<1x8x8xf32> to vector<8x8xf32>
    %345 = vector.broadcast %308 : vector<1x8xf32> to vector<8x8xf32>
    %346 = arith.mulf %344, %345 : vector<8x8xf32>
    %347 = arith.addf %342, %346 : vector<8x8xf32>
    %c5 = arith.constant 5 : index
    %c0_13 = arith.constant 0 : index
    %c0_14 = arith.constant 0 : index
    %348 = vector.load %arg1[%c5, %c0_13, %c0_14] : memref<8x8x8xf32, #tpu.memory_space<vmem>>, vector<1x8x8xf32>
    %349 = vector.shape_cast %348 : vector<1x8x8xf32> to vector<8x8xf32>
    %350 = vector.shape_cast %347 : vector<8x8xf32> to vector<1x8x8xf32>
    tpu.vector_store %arg1[%c5, %c0_13, %c0_14], %350 {strides = array<i32>} : memref<8x8x8xf32, #tpu.memory_space<vmem>>, vector<1x8x8xf32>,
    %351 = vector.extract_strided_slice %2 {offsets = [6, 0, 0], sizes = [1, 1, 8], strides = [1, 1, 1]} : vector<8x8x8xf32> to vector<1x1x8xf32>
    %352 = vector.shape_cast %351 : vector<1x1x8xf32> to vector<1x8xf32>
    %353 = vector.extract_strided_slice %2 {offsets = [6, 1, 0], sizes = [1, 1, 8], strides = [1, 1, 1]} : vector<8x8x8xf32> to vector<1x1x8xf32>
    %354 = vector.shape_cast %353 : vector<1x1x8xf32> to vector<1x8xf32>
    %355 = vector.extract_strided_slice %2 {offsets = [6, 2, 0], sizes = [1, 1, 8], strides = [1, 1, 1]} : vector<8x8x8xf32> to vector<1x1x8xf32>
    %356 = vector.shape_cast %355 : vector<1x1x8xf32> to vector<1x8xf32>
    %357 = vector.extract_strided_slice %2 {offsets = [6, 3, 0], sizes = [1, 1, 8], strides = [1, 1, 1]} : vector<8x8x8xf32> to vector<1x1x8xf32>
    %358 = vector.shape_cast %357 : vector<1x1x8xf32> to vector<1x8xf32>
    %359 = vector.extract_strided_slice %2 {offsets = [6, 4, 0], sizes = [1, 1, 8], strides = [1, 1, 1]} : vector<8x8x8xf32> to vector<1x1x8xf32>
    %360 = vector.shape_cast %359 : vector<1x1x8xf32> to vector<1x8xf32>
    %361 = vector.extract_strided_slice %2 {offsets = [6, 5, 0], sizes = [1, 1, 8], strides = [1, 1, 1]} : vector<8x8x8xf32> to vector<1x1x8xf32>
    %362 = vector.shape_cast %361 : vector<1x1x8xf32> to vector<1x8xf32>
    %363 = vector.extract_strided_slice %2 {offsets = [6, 6, 0], sizes = [1, 1, 8], strides = [1, 1, 1]} : vector<8x8x8xf32> to vector<1x1x8xf32>
    %364 = vector.shape_cast %363 : vector<1x1x8xf32> to vector<1x8xf32>
    %365 = vector.extract_strided_slice %2 {offsets = [6, 7, 0], sizes = [1, 1, 8], strides = [1, 1, 1]} : vector<8x8x8xf32> to vector<1x1x8xf32>
    %366 = vector.shape_cast %365 : vector<1x1x8xf32> to vector<1x8xf32>
    %367 = vector.extract_strided_slice %2 {offsets = [0, 0, 0], sizes = [1, 8, 8], strides = [1, 1, 1]} : vector<8x8x8xf32> to vector<1x8x8xf32>
    %368 = vector.shape_cast %367 : vector<1x8x8xf32> to vector<8x8xf32>
    %369 = vector.broadcast %352 : vector<1x8xf32> to vector<8x8xf32>
    %370 = arith.mulf %368, %369 : vector<8x8xf32>
    %371 = vector.extract_strided_slice %2 {offsets = [1, 0, 0], sizes = [1, 8, 8], strides = [1, 1, 1]} : vector<8x8x8xf32> to vector<1x8x8xf32>
    %372 = vector.shape_cast %371 : vector<1x8x8xf32> to vector<8x8xf32>
    %373 = vector.broadcast %354 : vector<1x8xf32> to vector<8x8xf32>
    %374 = arith.mulf %372, %373 : vector<8x8xf32>
    %375 = arith.addf %370, %374 : vector<8x8xf32>
    %376 = vector.extract_strided_slice %2 {offsets = [2, 0, 0], sizes = [1, 8, 8], strides = [1, 1, 1]} : vector<8x8x8xf32> to vector<1x8x8xf32>
    %377 = vector.shape_cast %376 : vector<1x8x8xf32> to vector<8x8xf32>
    %378 = vector.broadcast %356 : vector<1x8xf32> to vector<8x8xf32>
    %379 = arith.mulf %377, %378 : vector<8x8xf32>
    %380 = arith.addf %375, %379 : vector<8x8xf32>
    %381 = vector.extract_strided_slice %2 {offsets = [3, 0, 0], sizes = [1, 8, 8], strides = [1, 1, 1]} : vector<8x8x8xf32> to vector<1x8x8xf32>
    %382 = vector.shape_cast %381 : vector<1x8x8xf32> to vector<8x8xf32>
    %383 = vector.broadcast %358 : vector<1x8xf32> to vector<8x8xf32>
    %384 = arith.mulf %382, %383 : vector<8x8xf32>
    %385 = arith.addf %380, %384 : vector<8x8xf32>
    %386 = vector.extract_strided_slice %2 {offsets = [4, 0, 0], sizes = [1, 8, 8], strides = [1, 1, 1]} : vector<8x8x8xf32> to vector<1x8x8xf32>
    %387 = vector.shape_cast %386 : vector<1x8x8xf32> to vector<8x8xf32>
    %388 = vector.broadcast %360 : vector<1x8xf32> to vector<8x8xf32>
    %389 = arith.mulf %387, %388 : vector<8x8xf32>
    %390 = arith.addf %385, %389 : vector<8x8xf32>
    %391 = vector.extract_strided_slice %2 {offsets = [5, 0, 0], sizes = [1, 8, 8], strides = [1, 1, 1]} : vector<8x8x8xf32> to vector<1x8x8xf32>
    %392 = vector.shape_cast %391 : vector<1x8x8xf32> to vector<8x8xf32>
    %393 = vector.broadcast %362 : vector<1x8xf32> to vector<8x8xf32>
    %394 = arith.mulf %392, %393 : vector<8x8xf32>
    %395 = arith.addf %390, %394 : vector<8x8xf32>
    %396 = vector.extract_strided_slice %2 {offsets = [6, 0, 0], sizes = [1, 8, 8], strides = [1, 1, 1]} : vector<8x8x8xf32> to vector<1x8x8xf32>
    %397 = vector.shape_cast %396 : vector<1x8x8xf32> to vector<8x8xf32>
    %398 = vector.broadcast %364 : vector<1x8xf32> to vector<8x8xf32>
    %399 = arith.mulf %397, %398 : vector<8x8xf32>
    %400 = arith.addf %395, %399 : vector<8x8xf32>
    %401 = vector.extract_strided_slice %2 {offsets = [7, 0, 0], sizes = [1, 8, 8], strides = [1, 1, 1]} : vector<8x8x8xf32> to vector<1x8x8xf32>
    %402 = vector.shape_cast %401 : vector<1x8x8xf32> to vector<8x8xf32>
    %403 = vector.broadcast %366 : vector<1x8xf32> to vector<8x8xf32>
    %404 = arith.mulf %402, %403 : vector<8x8xf32>
    %405 = arith.addf %400, %404 : vector<8x8xf32>
    %c6 = arith.constant 6 : index
    %c0_15 = arith.constant 0 : index
    %c0_16 = arith.constant 0 : index
    %406 = vector.load %arg1[%c6, %c0_15, %c0_16] : memref<8x8x8xf32, #tpu.memory_space<vmem>>, vector<1x8x8xf32>
    %407 = vector.shape_cast %406 : vector<1x8x8xf32> to vector<8x8xf32>
    %408 = vector.shape_cast %405 : vector<8x8xf32> to vector<1x8x8xf32>
    tpu.vector_store %arg1[%c6, %c0_15, %c0_16], %408 {strides = array<i32>} : memref<8x8x8xf32, #tpu.memory_space<vmem>>, vector<1x8x8xf32>,
    %409 = vector.extract_strided_slice %2 {offsets = [7, 0, 0], sizes = [1, 1, 8], strides = [1, 1, 1]} : vector<8x8x8xf32> to vector<1x1x8xf32>
    %410 = vector.shape_cast %409 : vector<1x1x8xf32> to vector<1x8xf32>
    %411 = vector.extract_strided_slice %2 {offsets = [7, 1, 0], sizes = [1, 1, 8], strides = [1, 1, 1]} : vector<8x8x8xf32> to vector<1x1x8xf32>
    %412 = vector.shape_cast %411 : vector<1x1x8xf32> to vector<1x8xf32>
    %413 = vector.extract_strided_slice %2 {offsets = [7, 2, 0], sizes = [1, 1, 8], strides = [1, 1, 1]} : vector<8x8x8xf32> to vector<1x1x8xf32>
    %414 = vector.shape_cast %413 : vector<1x1x8xf32> to vector<1x8xf32>
    %415 = vector.extract_strided_slice %2 {offsets = [7, 3, 0], sizes = [1, 1, 8], strides = [1, 1, 1]} : vector<8x8x8xf32> to vector<1x1x8xf32>
    %416 = vector.shape_cast %415 : vector<1x1x8xf32> to vector<1x8xf32>
    %417 = vector.extract_strided_slice %2 {offsets = [7, 4, 0], sizes = [1, 1, 8], strides = [1, 1, 1]} : vector<8x8x8xf32> to vector<1x1x8xf32>
    %418 = vector.shape_cast %417 : vector<1x1x8xf32> to vector<1x8xf32>
    %419 = vector.extract_strided_slice %2 {offsets = [7, 5, 0], sizes = [1, 1, 8], strides = [1, 1, 1]} : vector<8x8x8xf32> to vector<1x1x8xf32>
    %420 = vector.shape_cast %419 : vector<1x1x8xf32> to vector<1x8xf32>
    %421 = vector.extract_strided_slice %2 {offsets = [7, 6, 0], sizes = [1, 1, 8], strides = [1, 1, 1]} : vector<8x8x8xf32> to vector<1x1x8xf32>
    %422 = vector.shape_cast %421 : vector<1x1x8xf32> to vector<1x8xf32>
    %423 = vector.extract_strided_slice %2 {offsets = [7, 7, 0], sizes = [1, 1, 8], strides = [1, 1, 1]} : vector<8x8x8xf32> to vector<1x1x8xf32>
    %424 = vector.shape_cast %423 : vector<1x1x8xf32> to vector<1x8xf32>
    %425 = vector.extract_strided_slice %2 {offsets = [0, 0, 0], sizes = [1, 8, 8], strides = [1, 1, 1]} : vector<8x8x8xf32> to vector<1x8x8xf32>
    %426 = vector.shape_cast %425 : vector<1x8x8xf32> to vector<8x8xf32>
    %427 = vector.broadcast %410 : vector<1x8xf32> to vector<8x8xf32>
    %428 = arith.mulf %426, %427 : vector<8x8xf32>
    %429 = vector.extract_strided_slice %2 {offsets = [1, 0, 0], sizes = [1, 8, 8], strides = [1, 1, 1]} : vector<8x8x8xf32> to vector<1x8x8xf32>
    %430 = vector.shape_cast %429 : vector<1x8x8xf32> to vector<8x8xf32>
    %431 = vector.broadcast %412 : vector<1x8xf32> to vector<8x8xf32>
    %432 = arith.mulf %430, %431 : vector<8x8xf32>
    %433 = arith.addf %428, %432 : vector<8x8xf32>
    %434 = vector.extract_strided_slice %2 {offsets = [2, 0, 0], sizes = [1, 8, 8], strides = [1, 1, 1]} : vector<8x8x8xf32> to vector<1x8x8xf32>
    %435 = vector.shape_cast %434 : vector<1x8x8xf32> to vector<8x8xf32>
    %436 = vector.broadcast %414 : vector<1x8xf32> to vector<8x8xf32>
    %437 = arith.mulf %435, %436 : vector<8x8xf32>
    %438 = arith.addf %433, %437 : vector<8x8xf32>
    %439 = vector.extract_strided_slice %2 {offsets = [3, 0, 0], sizes = [1, 8, 8], strides = [1, 1, 1]} : vector<8x8x8xf32> to vector<1x8x8xf32>
    %440 = vector.shape_cast %439 : vector<1x8x8xf32> to vector<8x8xf32>
    %441 = vector.broadcast %416 : vector<1x8xf32> to vector<8x8xf32>
    %442 = arith.mulf %440, %441 : vector<8x8xf32>
    %443 = arith.addf %438, %442 : vector<8x8xf32>
    %444 = vector.extract_strided_slice %2 {offsets = [4, 0, 0], sizes = [1, 8, 8], strides = [1, 1, 1]} : vector<8x8x8xf32> to vector<1x8x8xf32>
    %445 = vector.shape_cast %444 : vector<1x8x8xf32> to vector<8x8xf32>
    %446 = vector.broadcast %418 : vector<1x8xf32> to vector<8x8xf32>
    %447 = arith.mulf %445, %446 : vector<8x8xf32>
    %448 = arith.addf %443, %447 : vector<8x8xf32>
    %449 = vector.extract_strided_slice %2 {offsets = [5, 0, 0], sizes = [1, 8, 8], strides = [1, 1, 1]} : vector<8x8x8xf32> to vector<1x8x8xf32>
    %450 = vector.shape_cast %449 : vector<1x8x8xf32> to vector<8x8xf32>
    %451 = vector.broadcast %420 : vector<1x8xf32> to vector<8x8xf32>
    %452 = arith.mulf %450, %451 : vector<8x8xf32>
    %453 = arith.addf %448, %452 : vector<8x8xf32>
    %454 = vector.extract_strided_slice %2 {offsets = [6, 0, 0], sizes = [1, 8, 8], strides = [1, 1, 1]} : vector<8x8x8xf32> to vector<1x8x8xf32>
    %455 = vector.shape_cast %454 : vector<1x8x8xf32> to vector<8x8xf32>
    %456 = vector.broadcast %422 : vector<1x8xf32> to vector<8x8xf32>
    %457 = arith.mulf %455, %456 : vector<8x8xf32>
    %458 = arith.addf %453, %457 : vector<8x8xf32>
    %459 = vector.extract_strided_slice %2 {offsets = [7, 0, 0], sizes = [1, 8, 8], strides = [1, 1, 1]} : vector<8x8x8xf32> to vector<1x8x8xf32>
    %460 = vector.shape_cast %459 : vector<1x8x8xf32> to vector<8x8xf32>
    %461 = vector.broadcast %424 : vector<1x8xf32> to vector<8x8xf32>
    %462 = arith.mulf %460, %461 : vector<8x8xf32>
    %463 = arith.addf %458, %462 : vector<8x8xf32>
    %c7 = arith.constant 7 : index
    %c0_17 = arith.constant 0 : index
    %c0_18 = arith.constant 0 : index
    %464 = vector.load %arg1[%c7, %c0_17, %c0_18] : memref<8x8x8xf32, #tpu.memory_space<vmem>>, vector<1x8x8xf32>
    %465 = vector.shape_cast %464 : vector<1x8x8xf32> to vector<8x8xf32>
    %466 = vector.shape_cast %463 : vector<8x8xf32> to vector<1x8x8xf32>
    tpu.vector_store %arg1[%c7, %c0_17, %c0_18], %466 {strides = array<i32>} : memref<8x8x8xf32, #tpu.memory_space<vmem>>, vector<1x8x8xf32>,
    return
  }
}

</mosaic_0001>

<llo_original>
// kernel: tpu_custom_call.1
$region0: #{tpu_custom_call.1}
  #allocation0 [shape = 'u32[]', space=smem, size = 0x4, offset = 0x4, fixed_abs, tag = 'smem constant byte address 0x4 - core index']
  #allocation1 [shape = 'u32[144,128]{1,0:T(1,128)}', space=vmem, size = 0x12000, scoped, tag = 'internal scratch']
  %s0 = inlined_call_operand.hbm [shape: f32[8,8,8], index: 0, kind: input, shape index: {}]
  %s1 = inlined_call_operand.hbm [shape: f32[8,8], index: 1, kind: output, shape index: {}]
  %s2 = sld [smem:[#allocation0]]
  $region18: #{tpu_custom_call.1} parent=0
    _
  %s4 = ssub.s32 1, %s2
  %s5 = scalar_select 0, %s4, %s2
  $region1: #{tpu_custom_call.1} parent=0
    #allocation2 [shape = 'u8[32768]{0}', space=vmem, size = 0x8000, scoped, tag = 'input window, operand 0, single buffered']
    #allocation3 [shape = 's32[1]{0}', space=sflag, size = 0x4, scoped, tag = 'scoped memory for tpu_custom_call.1']
    #allocation4 [shape = 's32[1]{0}', space=sflag, size = 0x4, scoped, tag = 'scoped memory for tpu_custom_call.1']
    #allocation5 [shape = 'u8[4096]{0}', space=vmem, size = 0x1000, scoped, tag = 'output window, operand 0, single buffered']
    %6 = vsyncpa [#allocation3], 0
    %7 = vsyncpa [#allocation4], 0
    // Predicated region
    $region2: #{tpu_custom_call.1} parent=1 // pred_check
      _
    $region3: #{tpu_custom_call.1} parent=1 // pred_check_branch
      %9 = sbr.rel (0) target = $region5
    $region4: #{tpu_custom_call.1} parent=1 // pred_region
      %s11 = ssub.s32 1024, 1024
      %12 = vsyncadd [#allocation3], %s11
      %s13 = sshll.u32 [#allocation2], 4
      %s14 = int_to_ptr.vmem [resolvable:$true] %s13
      %19 = dma.hbm_to_vmem [thread:$0]  %s0, 1024, %s14, [#allocation3], 128, 128, 8
    $region5: #{tpu_custom_call.1} parent=1 // pred_fallthru
      _
    // Predicated region
    $region6: #{tpu_custom_call.1} parent=1 // pred_check
      _
    $region7: #{tpu_custom_call.1} parent=1 // pred_check_branch
      %21 = sbr.rel (0) target = $region9
    $region8: #{tpu_custom_call.1} parent=1 // pred_region
      %22 = dma.done [#allocation3], 1024
    $region9: #{tpu_custom_call.1} parent=1 // pred_fallthru
      _
    %s23 = scalar_lea.vmem [#allocation2], 16
    %v24 = vld [vmem:[%s23 + $0x3] ss:$0 sm:$0xff]
    %vm25 = vcmask 64512
    %26 = vst.msk [vmem:[#allocation5] sm:$0xff] %vm25, %v24
    // Predicated region
    $region10: #{tpu_custom_call.1} parent=1 // pred_check
      _
    $region11: #{tpu_custom_call.1} parent=1 // pred_check_branch
      %28 = sbr.rel (0) target = $region13
    $region12: #{tpu_custom_call.1} parent=1 // pred_region
      %s30 = ssub.s32 128, 128
      %31 = vsyncadd [#allocation4], %s30
      %s33 = sshll.u32 [#allocation5], 4
      %s34 = int_to_ptr.vmem [resolvable:$true] %s33
      %36 = dma.vmem_to_hbm [thread:$0]  %s34, 128, %s1, [#allocation4]
    $region13: #{tpu_custom_call.1} parent=1 // pred_fallthru
      _
    // Predicated region
    $region14: #{tpu_custom_call.1} parent=1 // pred_check
      _
    $region15: #{tpu_custom_call.1} parent=1 // pred_check_branch
      %38 = sbr.rel (0) target = $region17
    $region16: #{tpu_custom_call.1} parent=1 // pred_region
      %39 = dma.done [#allocation4], 128
    $region17: #{tpu_custom_call.1} parent=1 // pred_fallthru
      _
    %40 = vsyncpa [#allocation3], 1
    %41 = vsyncpa [#allocation4], 1

// kernel: model_forward.1
$region0: #{model_forward.1}
  #allocation0 [shape = 'u32[]', space=smem, size = 0x4, offset = 0x4, fixed_abs, tag = 'smem constant byte address 0x4 - core index']
  #allocation1 [shape = 'u32[144,128]{1,0:T(1,128)}', space=vmem, size = 0x12000, scoped, tag = 'internal scratch']
  #allocation2 [shape = 'f32[8,8,8]{2,1,0:T(8,128)}', space=vmem, size = 0x8000, scoped, tag = 'scratch operand']
  %s0 = inlined_call_operand.hbm [shape: f32[8,8,8], index: 0, kind: input, shape index: {}]
  %s1 = inlined_call_operand.hbm [shape: f32[8,8,8], index: 1, kind: output, shape index: {}]
  %s2 = sld [smem:[#allocation0]]
  $region18: #{model_forward.1} parent=0
    _
  %s4 = ssub.s32 1, %s2
  %s5 = scalar_select 0, %s4, %s2
  $region1: #{model_forward.1} parent=0
    #allocation3 [shape = 'u8[32768]{0}', space=vmem, size = 0x8000, scoped, tag = 'input window, operand 0, single buffered']
    #allocation4 [shape = 's32[1]{0}', space=sflag, size = 0x4, scoped, tag = 'scoped memory for model_forward.1']
    #allocation5 [shape = 's32[1]{0}', space=sflag, size = 0x4, scoped, tag = 'scoped memory for model_forward.1']
    #allocation6 [shape = 'u8[32768]{0}', space=vmem, size = 0x8000, scoped, tag = 'output window, operand 0, single buffered']
    %6 = vsyncpa [#allocation4], 0
    %7 = vsyncpa [#allocation5], 0
    // Predicated region
    $region2: #{model_forward.1} parent=1 // pred_check
      _
    $region3: #{model_forward.1} parent=1 // pred_check_branch
      %9 = sbr.rel (0) target = $region5
    $region4: #{model_forward.1} parent=1 // pred_region
      %s11 = ssub.s32 1024, 1024
      %12 = vsyncadd [#allocation4], %s11
      %s13 = sshll.u32 [#allocation3], 4
      %s14 = int_to_ptr.vmem [resolvable:$true] %s13
      %19 = dma.hbm_to_vmem [thread:$0]  %s0, 1024, %s14, [#allocation4], 128, 128, 8
    $region5: #{model_forward.1} parent=1 // pred_fallthru
      _
    // Predicated region
    $region6: #{model_forward.1} parent=1 // pred_check
      _
    $region7: #{model_forward.1} parent=1 // pred_check_branch
      %21 = sbr.rel (0) target = $region9
    $region8: #{model_forward.1} parent=1 // pred_region
      %22 = dma.done [#allocation4], 1024
    $region9: #{model_forward.1} parent=1 // pred_fallthru
      _
    %v23 = vld [vmem:[#allocation3] sm:$0xff]
    %v24 = vld [vmem:[#allocation3 + $0x8] sm:$0xff]
    %v25 = vld [vmem:[#allocation3 + $0x10] sm:$0xff]
    %v26 = vld [vmem:[#allocation3 + $0x18] sm:$0xff]
    %v27 = vld [vmem:[#allocation3 + $0x20] sm:$0xff]
    %v28 = vld [vmem:[#allocation3 + $0x28] sm:$0xff]
    %v29 = vld [vmem:[#allocation3 + $0x30] sm:$0xff]
    %v30 = vld [vmem:[#allocation3 + $0x38] sm:$0xff]
    %v31 = vsub.f32 %v23, 3.0
    %v32 = vsub.f32 %v24, 3.0
    %v33 = vsub.f32 %v25, 3.0
    %v34 = vsub.f32 %v26, 3.0
    %v35 = vsub.f32 %v27, 3.0
    %v36 = vsub.f32 %v28, 3.0
    %v37 = vsub.f32 %v29, 3.0
    %v38 = vsub.f32 %v30, 3.0
    %v39 = vlaneseq
    %v40 = vshrl.u32 %v39, 7
    %v41 = vsub.s32 0, %v40
    %v42 = vrot.slane %v31, %v41
    %v43 = vmul.f32 %v31, %v42
    %v44 = vlaneseq
    %v45 = vshrl.u32 %v44, 7
    %v46 = vsub.s32 1, %v45
    %v47 = vrot.slane %v31, %v46
    %v48 = vmul.f32 %v32, %v47
    %v49 = vadd.f32 %v43, %v48
    %v50 = vlaneseq
    %v51 = vshrl.u32 %v50, 7
    %v52 = vsub.s32 2, %v51
    %v53 = vrot.slane %v31, %v52
    %v54 = vmul.f32 %v33, %v53
    %v55 = vadd.f32 %v49, %v54
    %v56 = vlaneseq
    %v57 = vshrl.u32 %v56, 7
    %v58 = vsub.s32 3, %v57
    %v59 = vrot.slane %v31, %v58
    %v60 = vmul.f32 %v34, %v59
    %v61 = vadd.f32 %v55, %v60
    %v62 = vlaneseq
    %v63 = vshrl.u32 %v62, 7
    %v64 = vsub.s32 4, %v63
    %v65 = vrot.slane %v31, %v64
    %v66 = vmul.f32 %v35, %v65
    %v67 = vadd.f32 %v61, %v66
    %v68 = vlaneseq
    %v69 = vshrl.u32 %v68, 7
    %v70 = vsub.s32 5, %v69
    %v71 = vrot.slane %v31, %v70
    %v72 = vmul.f32 %v36, %v71
    %v73 = vadd.f32 %v67, %v72
    %v74 = vlaneseq
    %v75 = vshrl.u32 %v74, 7
    %v76 = vsub.s32 6, %v75
    %v77 = vrot.slane %v31, %v76
    %v78 = vmul.f32 %v37, %v77
    %v79 = vadd.f32 %v73, %v78
    %v80 = vlaneseq
    %v81 = vshrl.u32 %v80, 7
    %v82 = vsub.s32 7, %v81
    %v83 = vrot.slane %v31, %v82
    %v84 = vmul.f32 %v38, %v83
    %v85 = vadd.f32 %v79, %v84
    %vm86 = vcmask 64512
    %87 = vst.msk [vmem:[#allocation6] sm:$0xff] %vm86, %v85
    %v88 = vlaneseq
    %v89 = vshrl.u32 %v88, 7
    %v90 = vsub.s32 0, %v89
    %v91 = vrot.slane %v32, %v90
    %v92 = vmul.f32 %v31, %v91
    %v93 = vlaneseq
    %v94 = vshrl.u32 %v93, 7
    %v95 = vsub.s32 1, %v94
    %v96 = vrot.slane %v32, %v95
    %v97 = vmul.f32 %v32, %v96
    %v98 = vadd.f32 %v92, %v97
    %v99 = vlaneseq
    %v100 = vshrl.u32 %v99, 7
    %v101 = vsub.s32 2, %v100
    %v102 = vrot.slane %v32, %v101
    %v103 = vmul.f32 %v33, %v102
    %v104 = vadd.f32 %v98, %v103
    %v105 = vlaneseq
    %v106 = vshrl.u32 %v105, 7
    %v107 = vsub.s32 3, %v106
    %v108 = vrot.slane %v32, %v107
    %v109 = vmul.f32 %v34, %v108
    %v110 = vadd.f32 %v104, %v109
    %v111 = vlaneseq
    %v112 = vshrl.u32 %v111, 7
    %v113 = vsub.s32 4, %v112
    %v114 = vrot.slane %v32, %v113
    %v115 = vmul.f32 %v35, %v114
    %v116 = vadd.f32 %v110, %v115
    %v117 = vlaneseq
    %v118 = vshrl.u32 %v117, 7
    %v119 = vsub.s32 5, %v118
    %v120 = vrot.slane %v32, %v119
    %v121 = vmul.f32 %v36, %v120
    %v122 = vadd.f32 %v116, %v121
    %v123 = vlaneseq
    %v124 = vshrl.u32 %v123, 7
    %v125 = vsub.s32 6, %v124
    %v126 = vrot.slane %v32, %v125
    %v127 = vmul.f32 %v37, %v126
    %v128 = vadd.f32 %v122, %v127
    %v129 = vlaneseq
    %v130 = vshrl.u32 %v129, 7
    %v131 = vsub.s32 7, %v130
    %v132 = vrot.slane %v32, %v131
    %v133 = vmul.f32 %v38, %v132
    %v134 = vadd.f32 %v128, %v133
    %s135 = scalar_lea.vmem [#allocation6], 8
    %136 = vst.msk [vmem:[%s135] sm:$0xff] %vm86, %v134
    %v137 = vlaneseq
    %v138 = vshrl.u32 %v137, 7
    %v139 = vsub.s32 0, %v138
    %v140 = vrot.slane %v33, %v139
    %v141 = vmul.f32 %v31, %v140
    %v142 = vlaneseq
    %v143 = vshrl.u32 %v142, 7
    %v144 = vsub.s32 1, %v143
    %v145 = vrot.slane %v33, %v144
    %v146 = vmul.f32 %v32, %v145
    %v147 = vadd.f32 %v141, %v146
    %v148 = vlaneseq
    %v149 = vshrl.u32 %v148, 7
    %v150 = vsub.s32 2, %v149
    %v151 = vrot.slane %v33, %v150
    %v152 = vmul.f32 %v33, %v151
    %v153 = vadd.f32 %v147, %v152
    %v154 = vlaneseq
    %v155 = vshrl.u32 %v154, 7
    %v156 = vsub.s32 3, %v155
    %v157 = vrot.slane %v33, %v156
    %v158 = vmul.f32 %v34, %v157
    %v159 = vadd.f32 %v153, %v158
    %v160 = vlaneseq
    %v161 = vshrl.u32 %v160, 7
    %v162 = vsub.s32 4, %v161
    %v163 = vrot.slane %v33, %v162
    %v164 = vmul.f32 %v35, %v163
    %v165 = vadd.f32 %v159, %v164
    %v166 = vlaneseq
    %v167 = vshrl.u32 %v166, 7
    %v168 = vsub.s32 5, %v167
    %v169 = vrot.slane %v33, %v168
    %v170 = vmul.f32 %v36, %v169
    %v171 = vadd.f32 %v165, %v170
    %v172 = vlaneseq
    %v173 = vshrl.u32 %v172, 7
    %v174 = vsub.s32 6, %v173
    %v175 = vrot.slane %v33, %v174
    %v176 = vmul.f32 %v37, %v175
    %v177 = vadd.f32 %v171, %v176
    %v178 = vlaneseq
    %v179 = vshrl.u32 %v178, 7
    %v180 = vsub.s32 7, %v179
    %v181 = vrot.slane %v33, %v180
    %v182 = vmul.f32 %v38, %v181
    %v183 = vadd.f32 %v177, %v182
    %s184 = scalar_lea.vmem [#allocation6], 16
    %185 = vst.msk [vmem:[%s184] sm:$0xff] %vm86, %v183
    %v186 = vlaneseq
    %v187 = vshrl.u32 %v186, 7
    %v188 = vsub.s32 0, %v187
    %v189 = vrot.slane %v34, %v188
    %v190 = vmul.f32 %v31, %v189
    %v191 = vlaneseq
    %v192 = vshrl.u32 %v191, 7
    %v193 = vsub.s32 1, %v192
    %v194 = vrot.slane %v34, %v193
    %v195 = vmul.f32 %v32, %v194
    %v196 = vadd.f32 %v190, %v195
    %v197 = vlaneseq
    %v198 = vshrl.u32 %v197, 7
    %v199 = vsub.s32 2, %v198
    %v200 = vrot.slane %v34, %v199
    %v201 = vmul.f32 %v33, %v200
    %v202 = vadd.f32 %v196, %v201
    %v203 = vlaneseq
    %v204 = vshrl.u32 %v203, 7
    %v205 = vsub.s32 3, %v204
    %v206 = vrot.slane %v34, %v205
    %v207 = vmul.f32 %v34, %v206
    %v208 = vadd.f32 %v202, %v207
    %v209 = vlaneseq
    %v210 = vshrl.u32 %v209, 7
    %v211 = vsub.s32 4, %v210
    %v212 = vrot.slane %v34, %v211
    %v213 = vmul.f32 %v35, %v212
    %v214 = vadd.f32 %v208, %v213
    %v215 = vlaneseq
    %v216 = vshrl.u32 %v215, 7
    %v217 = vsub.s32 5, %v216
    %v218 = vrot.slane %v34, %v217
    %v219 = vmul.f32 %v36, %v218
    %v220 = vadd.f32 %v214, %v219
    %v221 = vlaneseq
    %v222 = vshrl.u32 %v221, 7
    %v223 = vsub.s32 6, %v222
    %v224 = vrot.slane %v34, %v223
    %v225 = vmul.f32 %v37, %v224
    %v226 = vadd.f32 %v220, %v225
    %v227 = vlaneseq
    %v228 = vshrl.u32 %v227, 7
    %v229 = vsub.s32 7, %v228
    %v230 = vrot.slane %v34, %v229
    %v231 = vmul.f32 %v38, %v230
    %v232 = vadd.f32 %v226, %v231
    %s233 = scalar_lea.vmem [#allocation6], 24
    %234 = vst.msk [vmem:[%s233] sm:$0xff] %vm86, %v232
    %v235 = vlaneseq
    %v236 = vshrl.u32 %v235, 7
    %v237 = vsub.s32 0, %v236
    %v238 = vrot.slane %v35, %v237
    %v239 = vmul.f32 %v31, %v238
    %v240 = vlaneseq
    %v241 = vshrl.u32 %v240, 7
    %v242 = vsub.s32 1, %v241
    %v243 = vrot.slane %v35, %v242
    %v244 = vmul.f32 %v32, %v243
    %v245 = vadd.f32 %v239, %v244
    %v246 = vlaneseq
    %v247 = vshrl.u32 %v246, 7
    %v248 = vsub.s32 2, %v247
    %v249 = vrot.slane %v35, %v248
    %v250 = vmul.f32 %v33, %v249
    %v251 = vadd.f32 %v245, %v250
    %v252 = vlaneseq
    %v253 = vshrl.u32 %v252, 7
    %v254 = vsub.s32 3, %v253
    %v255 = vrot.slane %v35, %v254
    %v256 = vmul.f32 %v34, %v255
    %v257 = vadd.f32 %v251, %v256
    %v258 = vlaneseq
    %v259 = vshrl.u32 %v258, 7
    %v260 = vsub.s32 4, %v259
    %v261 = vrot.slane %v35, %v260
    %v262 = vmul.f32 %v35, %v261
    %v263 = vadd.f32 %v257, %v262
    %v264 = vlaneseq
    %v265 = vshrl.u32 %v264, 7
    %v266 = vsub.s32 5, %v265
    %v267 = vrot.slane %v35, %v266
    %v268 = vmul.f32 %v36, %v267
    %v269 = vadd.f32 %v263, %v268
    %v270 = vlaneseq
    %v271 = vshrl.u32 %v270, 7
    %v272 = vsub.s32 6, %v271
    %v273 = vrot.slane %v35, %v272
    %v274 = vmul.f32 %v37, %v273
    %v275 = vadd.f32 %v269, %v274
    %v276 = vlaneseq
    %v277 = vshrl.u32 %v276, 7
    %v278 = vsub.s32 7, %v277
    %v279 = vrot.slane %v35, %v278
    %v280 = vmul.f32 %v38, %v279
    %v281 = vadd.f32 %v275, %v280
    %s282 = scalar_lea.vmem [#allocation6], 32
    %283 = vst.msk [vmem:[%s282] sm:$0xff] %vm86, %v281
    %v284 = vlaneseq
    %v285 = vshrl.u32 %v284, 7
    %v286 = vsub.s32 0, %v285
    %v287 = vrot.slane %v36, %v286
    %v288 = vmul.f32 %v31, %v287
    %v289 = vlaneseq
    %v290 = vshrl.u32 %v289, 7
    %v291 = vsub.s32 1, %v290
    %v292 = vrot.slane %v36, %v291
    %v293 = vmul.f32 %v32, %v292
    %v294 = vadd.f32 %v288, %v293
    %v295 = vlaneseq
    %v296 = vshrl.u32 %v295, 7
    %v297 = vsub.s32 2, %v296
    %v298 = vrot.slane %v36, %v297
    %v299 = vmul.f32 %v33, %v298
    %v300 = vadd.f32 %v294, %v299
    %v301 = vlaneseq
    %v302 = vshrl.u32 %v301, 7
    %v303 = vsub.s32 3, %v302
    %v304 = vrot.slane %v36, %v303
    %v305 = vmul.f32 %v34, %v304
    %v306 = vadd.f32 %v300, %v305
    %v307 = vlaneseq
    %v308 = vshrl.u32 %v307, 7
    %v309 = vsub.s32 4, %v308
    %v310 = vrot.slane %v36, %v309
    %v311 = vmul.f32 %v35, %v310
    %v312 = vadd.f32 %v306, %v311
    %v313 = vlaneseq
    %v314 = vshrl.u32 %v313, 7
    %v315 = vsub.s32 5, %v314
    %v316 = vrot.slane %v36, %v315
    %v317 = vmul.f32 %v36, %v316
    %v318 = vadd.f32 %v312, %v317
    %v319 = vlaneseq
    %v320 = vshrl.u32 %v319, 7
    %v321 = vsub.s32 6, %v320
    %v322 = vrot.slane %v36, %v321
    %v323 = vmul.f32 %v37, %v322
    %v324 = vadd.f32 %v318, %v323
    %v325 = vlaneseq
    %v326 = vshrl.u32 %v325, 7
    %v327 = vsub.s32 7, %v326
    %v328 = vrot.slane %v36, %v327
    %v329 = vmul.f32 %v38, %v328
    %v330 = vadd.f32 %v324, %v329
    %s331 = scalar_lea.vmem [#allocation6], 40
    %332 = vst.msk [vmem:[%s331] sm:$0xff] %vm86, %v330
    %v333 = vlaneseq
    %v334 = vshrl.u32 %v333, 7
    %v335 = vsub.s32 0, %v334
    %v336 = vrot.slane %v37, %v335
    %v337 = vmul.f32 %v31, %v336
    %v338 = vlaneseq
    %v339 = vshrl.u32 %v338, 7
    %v340 = vsub.s32 1, %v339
    %v341 = vrot.slane %v37, %v340
    %v342 = vmul.f32 %v32, %v341
    %v343 = vadd.f32 %v337, %v342
    %v344 = vlaneseq
    %v345 = vshrl.u32 %v344, 7
    %v346 = vsub.s32 2, %v345
    %v347 = vrot.slane %v37, %v346
    %v348 = vmul.f32 %v33, %v347
    %v349 = vadd.f32 %v343, %v348
    %v350 = vlaneseq
    %v351 = vshrl.u32 %v350, 7
    %v352 = vsub.s32 3, %v351
    %v353 = vrot.slane %v37, %v352
    %v354 = vmul.f32 %v34, %v353
    %v355 = vadd.f32 %v349, %v354
    %v356 = vlaneseq
    %v357 = vshrl.u32 %v356, 7
    %v358 = vsub.s32 4, %v357
    %v359 = vrot.slane %v37, %v358
    %v360 = vmul.f32 %v35, %v359
    %v361 = vadd.f32 %v355, %v360
    %v362 = vlaneseq
    %v363 = vshrl.u32 %v362, 7
    %v364 = vsub.s32 5, %v363
    %v365 = vrot.slane %v37, %v364
    %v366 = vmul.f32 %v36, %v365
    %v367 = vadd.f32 %v361, %v366
    %v368 = vlaneseq
    %v369 = vshrl.u32 %v368, 7
    %v370 = vsub.s32 6, %v369
    %v371 = vrot.slane %v37, %v370
    %v372 = vmul.f32 %v37, %v371
    %v373 = vadd.f32 %v367, %v372
    %v374 = vlaneseq
    %v375 = vshrl.u32 %v374, 7
    %v376 = vsub.s32 7, %v375
    %v377 = vrot.slane %v37, %v376
    %v378 = vmul.f32 %v38, %v377
    %v379 = vadd.f32 %v373, %v378
    %s380 = scalar_lea.vmem [#allocation6], 48
    %381 = vst.msk [vmem:[%s380] sm:$0xff] %vm86, %v379
    %v382 = vlaneseq
    %v383 = vshrl.u32 %v382, 7
    %v384 = vsub.s32 0, %v383
    %v385 = vrot.slane %v38, %v384
    %v386 = vmul.f32 %v31, %v385
    %v387 = vlaneseq
    %v388 = vshrl.u32 %v387, 7
    %v389 = vsub.s32 1, %v388
    %v390 = vrot.slane %v38, %v389
    %v391 = vmul.f32 %v32, %v390
    %v392 = vadd.f32 %v386, %v391
    %v393 = vlaneseq
    %v394 = vshrl.u32 %v393, 7
    %v395 = vsub.s32 2, %v394
    %v396 = vrot.slane %v38, %v395
    %v397 = vmul.f32 %v33, %v396
    %v398 = vadd.f32 %v392, %v397
    %v399 = vlaneseq
    %v400 = vshrl.u32 %v399, 7
    %v401 = vsub.s32 3, %v400
    %v402 = vrot.slane %v38, %v401
    %v403 = vmul.f32 %v34, %v402
    %v404 = vadd.f32 %v398, %v403
    %v405 = vlaneseq
    %v406 = vshrl.u32 %v405, 7
    %v407 = vsub.s32 4, %v406
    %v408 = vrot.slane %v38, %v407
    %v409 = vmul.f32 %v35, %v408
    %v410 = vadd.f32 %v404, %v409
    %v411 = vlaneseq
    %v412 = vshrl.u32 %v411, 7
    %v413 = vsub.s32 5, %v412
    %v414 = vrot.slane %v38, %v413
    %v415 = vmul.f32 %v36, %v414
    %v416 = vadd.f32 %v410, %v415
    %v417 = vlaneseq
    %v418 = vshrl.u32 %v417, 7
    %v419 = vsub.s32 6, %v418
    %v420 = vrot.slane %v38, %v419
    %v421 = vmul.f32 %v37, %v420
    %v422 = vadd.f32 %v416, %v421
    %v423 = vlaneseq
    %v424 = vshrl.u32 %v423, 7
    %v425 = vsub.s32 7, %v424
    %v426 = vrot.slane %v38, %v425
    %v427 = vmul.f32 %v38, %v426
    %v428 = vadd.f32 %v422, %v427
    %s429 = scalar_lea.vmem [#allocation6], 56
    %430 = vst.msk [vmem:[%s429] sm:$0xff] %vm86, %v428
    // Predicated region
    $region10: #{model_forward.1} parent=1 // pred_check
      _
    $region11: #{model_forward.1} parent=1 // pred_check_branch
      %432 = sbr.rel (0) target = $region13
    $region12: #{model_forward.1} parent=1 // pred_region
      %s434 = ssub.s32 1024, 1024
      %435 = vsyncadd [#allocation5], %s434
      %s436 = sshll.u32 [#allocation6], 4
      %s437 = int_to_ptr.vmem [resolvable:$true] %s436
      %442 = dma.vmem_to_hbm [thread:$0]  %s437, 1024, %s1, [#allocation5], 128, 128, 8
    $region13: #{model_forward.1} parent=1 // pred_fallthru
      _
    // Predicated region
    $region14: #{model_forward.1} parent=1 // pred_check
      _
    $region15: #{model_forward.1} parent=1 // pred_check_branch
      %444 = sbr.rel (0) target = $region17
    $region16: #{model_forward.1} parent=1 // pred_region
      %445 = dma.done [#allocation5], 1024
    $region17: #{model_forward.1} parent=1 // pred_fallthru
      _
    %446 = vsyncpa [#allocation4], 1
    %447 = vsyncpa [#allocation5], 1

</llo_original>
